<compile_context>
chip_gen: v5e
topology: v5e:2x2
jax: 0.10.0
libtpu: 0.0.40
codegen_flags: <defaults>
</compile_context>

<pallas_src>
import jax
import jax.numpy as jnp
from jax.experimental import pallas as pl
from jax.experimental.pallas import tpu as pltpu


def dot_attention_kernel(q_ref, items_ref, mask_ref, blend_ref, attn_ref):
    # q_ref:     (TB, H)     input dtype
    # items_ref: (TB, N, H)  input dtype
    # mask_ref:  (TB, N)     any dtype; nonzero == keep
    # blend_ref: (TB, H)     f32 output
    # attn_ref:  (TB, N)     f32 output
    items = items_ref[...].astype(jnp.float32)
    q = q_ref[...].astype(jnp.float32)

    # Reactivity: scores[b, n] = sum_h items[b, n, h] * q[b, h].
    # VPU multiply + reduce over the minor (H) axis; avoids pushing the big
    # items tile as MXU weights for a single LHS row (weight-push bound).
    scores = jnp.sum(items * q[:, None, :], axis=-1)            # (TB, N) f32

    # masked_fill(mask == 0, -inf): large finite fill keeps fully masked rows
    # (and any out-of-range batch rows in a ragged last block) NaN-free.
    scores = jnp.where(mask_ref[...] != 0, scores, -1e30)

    # Row softmax over the item axis, all in f32 (exp on the EUP).
    m = jnp.max(scores, axis=-1, keepdims=True)                 # (TB, 1)
    e = jnp.exp(scores - m)                                     # (TB, N)
    denom = jnp.sum(e, axis=-1, keepdims=True)                  # (TB, 1)
    attn = e / denom                                            # (TB, N)
    attn_ref[...] = attn.astype(attn_ref.dtype)

    # Blend: blend[b, h] = sum_n attn[b, n] * items[b, n, h].
    # Broadcast over the H lane axis, reduce over the N sublane axis (VPU/XLU)
    # -- no second per-batch MXU weight push.
    blend = jnp.sum(attn[:, :, None] * items, axis=1)           # (TB, H)
    blend_ref[...] = blend.astype(blend_ref.dtype)


def _choose_batch_tile(B, N, H, itemsize, target_block_bytes=6 << 20):
    """Pick the batch-tile size TB (rows per grid step)."""
    if B <= 8:
        # Single block: every block dim equals the full array dim, which is
        # always layout-legal, and there is no padding / extra copy.
        return B
    row_bytes = max(1, N * H * itemsize)
    tb = max(8, target_block_bytes // row_bytes)
    # Sublane-friendly: multiple of 16 preferred, never below 8 when tiling.
    tb = (tb // 16) * 16 if tb >= 16 else 8
    # Keep at least 2 grid steps so the "parallel" axis can be sharded across
    # TensorCores (v7x megacore) and input/output DMAs can pipeline.
    half = -(-B // 2)                       # ceil(B / 2)
    half_aligned = max(8, ((half + 7) // 8) * 8)
    tb = min(tb, half_aligned)
    if tb >= 16:
        tb = (tb // 16) * 16
    else:
        tb = 8
    return tb


@jax.jit
def dot_attention(query_vector, multiple_items, mask):
    B, N, H = multiple_items.shape
    assert query_vector.shape == (B, H)
    assert mask.shape == (B, N)

    itemsize = jnp.dtype(multiple_items.dtype).itemsize
    tb = _choose_batch_tile(B, N, H, itemsize)
    grid = (pl.cdiv(B, tb),)

    # Rough per-step VMEM footprint (double-buffered by the pipeline); keep
    # the scoped-VMEM limit explicit and well under v7x's 64 MiB physical VMEM.
    step_bytes = (tb * N * H * itemsize            # items block
                  + tb * H * (itemsize + 4)        # q block + blend out
                  + tb * N * (itemsize + 4))       # mask block + attn out
    vmem_limit = int(min(48 << 20, max(16 << 20, 3 * step_bytes)))

    blended, attn = pl.pallas_call(
        dot_attention_kernel,
        out_shape=(
            jax.ShapeDtypeStruct((B, H), jnp.float32),
            jax.ShapeDtypeStruct((B, N), jnp.float32),
        ),
        grid_spec=pltpu.PrefetchScalarGridSpec(
            num_scalar_prefetch=0,
            grid=grid,
            in_specs=[
                pl.BlockSpec((tb, H), lambda b: (b, 0)),
                pl.BlockSpec((tb, N, H), lambda b: (b, 0, 0)),
                pl.BlockSpec((tb, N), lambda b: (b, 0)),
            ],
            out_specs=[
                pl.BlockSpec((tb, H), lambda b: (b, 0)),
                pl.BlockSpec((tb, N), lambda b: (b, 0)),
            ],
        ),
        compiler_params=pltpu.CompilerParams(
            dimension_semantics=("parallel",),
            vmem_limit_bytes=vmem_limit,
        ),
        cost_estimate=pl.CostEstimate(
            flops=4 * B * N * H,
            transcendentals=B * N,
            bytes_accessed=(B * N * H * itemsize
                            + B * H * itemsize
                            + B * N * jnp.dtype(mask.dtype).itemsize
                            + B * H * 4 + B * N * 4),
        ),
    )(query_vector, multiple_items, mask)

    # The PyTorch forward returns attention_scores after .unsqueeze(1).
    return blended, attn[:, None, :]


def _reference(query_vector, multiple_items, mask):
    scores = jnp.einsum("bnh,bh->bn", multiple_items, query_vector)
    scores = jnp.where(mask == 0, -jnp.inf, scores)
    attn = jax.nn.softmax(scores, axis=1)
    blended = jnp.einsum("bn,bnh->bh", attn, multiple_items)
    return blended, attn[:, None, :]


if __name__ == "__main__":
    B, N, H = 2, 8, 32  # DotAttention requires item_dim == query_dim == H

    key = jax.random.PRNGKey(0)
    kq, ki = jax.random.split(key)
    query_vector = jax.random.normal(kq, (B, H), dtype=jnp.float32)
    multiple_items = jax.random.normal(ki, (B, N, H), dtype=jnp.float32)
    # Deterministic mask: mask out the last two items of batch 1.
    mask = jnp.ones((B, N), dtype=jnp.float32).at[1, N - 2:].set(0.0)

    blended, attn = dot_attention(query_vector, multiple_items, mask)
    jax.block_until_ready((blended, attn))

    assert blended.shape == (B, H)
    assert attn.shape == (B, 1, N)

    ref_blended, ref_attn = _reference(query_vector, multiple_items, mask)
    assert jnp.allclose(blended, ref_blended, atol=1e-4, rtol=1e-4), (
        float(jnp.max(jnp.abs(blended - ref_blended))))
    assert jnp.allclose(attn, ref_attn, atol=1e-4, rtol=1e-4), (
        float(jnp.max(jnp.abs(attn - ref_attn))))

    print("KERNEL_OK")
</pallas_src>

<mosaic_0001>
module attributes {stable_mosaic.version = 11 : i64} {
  func.func @dot_attention_kernel(%arg0: i32, %arg1: memref<2x32xf32, #tpu.memory_space<vmem>>, %arg2: memref<2x8x32xf32, #tpu.memory_space<vmem>>, %arg3: memref<2x8xf32, #tpu.memory_space<vmem>>, %arg4: memref<2x32xf32, #tpu.memory_space<vmem>>, %arg5: memref<2x8xf32, #tpu.memory_space<vmem>>) attributes {dimension_semantics = [#tpu.dimension_semantics<parallel>], iteration_bounds = array<i64: 1>, scalar_prefetch = 0 : i64, scratch_operands = 0 : i64, tpu.core_type = #tpu.core_type<tc>, window_params = [{transform_indices = @transform_0, window_bounds = array<i64: 2, 32>}, {transform_indices = @transform_1, window_bounds = array<i64: 2, 8, 32>}, {transform_indices = @transform_2, window_bounds = array<i64: 2, 8>}, {transform_indices = @transform_3, window_bounds = array<i64: 2, 32>}, {transform_indices = @transform_4, window_bounds = array<i64: 2, 8>}]} {
    %c0 = arith.constant 0 : index
    %c0_0 = arith.constant 0 : index
    %c0_1 = arith.constant 0 : index
    %0 = vector.load %arg2[%c0, %c0_0, %c0_1] : memref<2x8x32xf32, #tpu.memory_space<vmem>>, vector<2x8x32xf32>
    %c0_2 = arith.constant 0 : index
    %c0_3 = arith.constant 0 : index
    %1 = vector.load %arg1[%c0_2, %c0_3] : memref<2x32xf32, #tpu.memory_space<vmem>>, vector<2x32xf32>
    %2 = vector.shape_cast %1 : vector<2x32xf32> to vector<2x1x32xf32>
    %3 = vector.broadcast %2 : vector<2x1x32xf32> to vector<2x8x32xf32>
    %4 = arith.mulf %0, %3 : vector<2x8x32xf32>
    %cst = arith.constant dense<0.000000e+00> : vector<2x8xf32>
    %5 = vector.multi_reduction <add>, %4, %cst [2] : vector<2x8x32xf32> to vector<2x8xf32>
    %c0_4 = arith.constant 0 : index
    %c0_5 = arith.constant 0 : index
    %6 = vector.load %arg3[%c0_4, %c0_5] : memref<2x8xf32, #tpu.memory_space<vmem>>, vector<2x8xf32>
    %cst_6 = arith.constant 0.000000e+00 : f32
    %7 = vector.broadcast %cst_6 : f32 to vector<2x8xf32>
    %8 = arith.cmpf one, %6, %7 : vector<2x8xf32>
    %cst_7 = arith.constant -1.000000e+30 : f32
    %9 = vector.broadcast %cst_7 : f32 to vector<2x8xf32>
    %10 = arith.select %8, %5, %9 : vector<2x8xi1>, vector<2x8xf32>
    %cst_8 = arith.constant dense<0xFF800000> : vector<2xf32>
    %11 = vector.multi_reduction <maximumf>, %10, %cst_8 [1] : vector<2x8xf32> to vector<2xf32>
    %12 = vector.shape_cast %11 : vector<2xf32> to vector<2x1xf32>
    %13 = vector.broadcast %12 : vector<2x1xf32> to vector<2x8xf32>
    %14 = arith.subf %10, %13 : vector<2x8xf32>
    %15 = math.exp %14 : vector<2x8xf32>
    %cst_9 = arith.constant dense<0.000000e+00> : vector<2xf32>
    %16 = vector.multi_reduction <add>, %15, %cst_9 [1] : vector<2x8xf32> to vector<2xf32>
    %17 = vector.shape_cast %16 : vector<2xf32> to vector<2x1xf32>
    %18 = vector.broadcast %17 : vector<2x1xf32> to vector<2x8xf32>
    %19 = arith.divf %15, %18 : vector<2x8xf32>
    %c0_10 = arith.constant 0 : index
    %c0_11 = arith.constant 0 : index
    %20 = vector.load %arg5[%c0_10, %c0_11] : memref<2x8xf32, #tpu.memory_space<vmem>>, vector<2x8xf32>
    tpu.vector_store %arg5[%c0_10, %c0_11], %19 {strides = array<i32>} : memref<2x8xf32, #tpu.memory_space<vmem>>, vector<2x8xf32>,
    %21 = vector.shape_cast %19 : vector<2x8xf32> to vector<2x8x1xf32>
    %22 = vector.broadcast %21 : vector<2x8x1xf32> to vector<2x8x32xf32>
    %23 = arith.mulf %22, %0 : vector<2x8x32xf32>
    %cst_12 = arith.constant dense<0.000000e+00> : vector<2x32xf32>
    %24 = vector.multi_reduction <add>, %23, %cst_12 [1] : vector<2x8x32xf32> to vector<2x32xf32>
    %c0_13 = arith.constant 0 : index
    %c0_14 = arith.constant 0 : index
    %25 = vector.load %arg4[%c0_13, %c0_14] : memref<2x32xf32, #tpu.memory_space<vmem>>, vector<2x32xf32>
    tpu.vector_store %arg4[%c0_13, %c0_14], %24 {strides = array<i32>} : memref<2x32xf32, #tpu.memory_space<vmem>>, vector<2x32xf32>,
    return
  }
  func.func @transform_0(%arg0: i32) -> (i32, i32) {
    %c0_i32 = arith.constant 0 : i32
    %c0_i32_0 = arith.constant 0 : i32
    return %arg0, %c0_i32 : i32, i32
  }
  func.func @transform_1(%arg0: i32) -> (i32, i32, i32) {
    %c0_i32 = arith.constant 0 : i32
    %c0_i32_0 = arith.constant 0 : i32
    %c0_i32_1 = arith.constant 0 : i32
    return %arg0, %c0_i32, %c0_i32_0 : i32, i32, i32
  }
  func.func @transform_2(%arg0: i32) -> (i32, i32) {
    %c0_i32 = arith.constant 0 : i32
    %c0_i32_0 = arith.constant 0 : i32
    return %arg0, %c0_i32 : i32, i32
  }
  func.func @transform_3(%arg0: i32) -> (i32, i32) {
    %c0_i32 = arith.constant 0 : i32
    %c0_i32_0 = arith.constant 0 : i32
    return %arg0, %c0_i32 : i32, i32
  }
  func.func @transform_4(%arg0: i32) -> (i32, i32) {
    %c0_i32 = arith.constant 0 : i32
    %c0_i32_0 = arith.constant 0 : i32
    return %arg0, %c0_i32 : i32, i32
  }
}

</mosaic_0001>

<llo_original>
// kernel: dot_attention.1
$region0: #{dot_attention.1}
  #allocation0 [shape = 'u32[]', space=smem, size = 0x4, offset = 0x4, fixed_abs, tag = 'smem constant byte address 0x4 - core index']
  #allocation1 [shape = 'u32[72,128]{1,0:T(1,128)}', space=vmem, size = 0x9000, scoped, tag = 'internal scratch']
  %s0 = inlined_call_operand.hbm [shape: f32[2,32], index: 0, kind: input, shape index: {}]
  %s1 = inlined_call_operand.hbm [shape: f32[2,8,32], index: 1, kind: input, shape index: {}]
  %s2 = inlined_call_operand.hbm [shape: f32[2,8], index: 2, kind: input, shape index: {}]
  %s3 = inlined_call_operand.hbm [shape: f32[2,32], index: 3, kind: output, shape index: {0}]
  %s4 = inlined_call_operand.hbm [shape: f32[2,8], index: 4, kind: output, shape index: {1}]
  %5 = xla_tuple %s3, %s4
  %s6 = sld [smem:[#allocation0]]
  $region42: #{dot_attention.1} parent=0
    _
  %s8 = ssub.s32 1, %s6
  %s9 = scalar_select 0, %s8, %s6
  $region1: #{dot_attention.1} parent=0
    #allocation2 [shape = 'u8[1024]{0}', space=vmem, size = 0x400, scoped, tag = 'input window, operand 0, single buffered']
    #allocation3 [shape = 's32[1]{0}', space=sflag, size = 0x4, scoped, tag = 'scoped memory for dot_attention.1']
    #allocation4 [shape = 's32[1]{0}', space=sflag, size = 0x4, scoped, tag = 'scoped memory for dot_attention.1']
    #allocation5 [shape = 'u8[8192]{0}', space=vmem, size = 0x2000, scoped, tag = 'input window, operand 1, single buffered']
    #allocation6 [shape = 's32[1]{0}', space=sflag, size = 0x4, scoped, tag = 'scoped memory for dot_attention.1']
    #allocation7 [shape = 'u8[1024]{0}', space=vmem, size = 0x400, scoped, tag = 'input window, operand 2, single buffered']
    #allocation8 [shape = 'u8[1024]{0}', space=vmem, size = 0x400, scoped, tag = 'output window, operand 0, single buffered']
    #allocation9 [shape = 'u8[1024]{0}', space=vmem, size = 0x400, scoped, tag = 'output window, operand 1, single buffered']
    #allocation10 [shape = 's32[1]{0}', space=sflag, size = 0x4, scoped, tag = 'scoped memory for dot_attention.1']
    %10 = vsyncpa [#allocation3], 0
    %11 = vsyncpa [#allocation6], 0
    %12 = vsyncpa [#allocation4], 0
    %13 = vsyncpa [#allocation10], 0
    // Predicated region
    $region2: #{dot_attention.1} parent=1 // pred_check
      _
    $region3: #{dot_attention.1} parent=1 // pred_check_branch
      %15 = sbr.rel (0) target = $region5
    $region4: #{dot_attention.1} parent=1 // pred_region
      %17 = vsyncadd [#allocation3], 0
      %s19 = sshll.u32 %s0, 4
      %s20 = int_to_ptr.hbm [resolvable:$true] %s19
      %s21 = sshll.u32 [#allocation2], 4
      %s22 = int_to_ptr.vmem [resolvable:$true] %s21
      %24 = dma.hbm_to_vmem [thread:$0]  %s20, 32, %s22, [#allocation3]
    $region5: #{dot_attention.1} parent=1 // pred_fallthru
      _
    // Predicated region
    $region6: #{dot_attention.1} parent=1 // pred_check
      _
    $region7: #{dot_attention.1} parent=1 // pred_check_branch
      %26 = sbr.rel (0) target = $region9
    $region8: #{dot_attention.1} parent=1 // pred_region
      %28 = vsyncadd [#allocation6], 0
      %s29 = sshll.u32 %s1, 4
      %s30 = int_to_ptr.hbm [resolvable:$true] %s29
      %s31 = sshll.u32 [#allocation5], 4
      %s32 = int_to_ptr.vmem [resolvable:$true] %s31
      %37 = dma.hbm_to_vmem [thread:$0]  %s30, 256, %s32, [#allocation6], 128, 128, 8
    $region9: #{dot_attention.1} parent=1 // pred_fallthru
      _
    // Predicated region
    $region10: #{dot_attention.1} parent=1 // pred_check
      _
    $region11: #{dot_attention.1} parent=1 // pred_check_branch
      %39 = sbr.rel (0) target = $region13
    $region12: #{dot_attention.1} parent=1 // pred_region
      %41 = vsyncadd [#allocation6], 0
      %s43 = sshll.u32 %s2, 4
      %s44 = int_to_ptr.hbm [resolvable:$true] %s43
      %s45 = sshll.u32 [#allocation7], 4
      %s46 = int_to_ptr.vmem [resolvable:$true] %s45
      %48 = dma.hbm_to_vmem [thread:$0]  %s44, 32, %s46, [#allocation6]
    $region13: #{dot_attention.1} parent=1 // pred_fallthru
      _
    // Predicated region
    $region14: #{dot_attention.1} parent=1 // pred_check
      _
    $region15: #{dot_attention.1} parent=1 // pred_check_branch
      %50 = sbr.rel (0) target = $region17
    $region16: #{dot_attention.1} parent=1 // pred_region
      %52 = dma.done [#allocation3], 32
    $region17: #{dot_attention.1} parent=1 // pred_fallthru
      _
    // Predicated region
    $region18: #{dot_attention.1} parent=1 // pred_check
      _
    $region19: #{dot_attention.1} parent=1 // pred_check_branch
      %54 = sbr.rel (0) target = $region21
    $region20: #{dot_attention.1} parent=1 // pred_region
      %56 = dma.done [#allocation6], 256
    $region21: #{dot_attention.1} parent=1 // pred_fallthru
      _
    // Predicated region
    $region22: #{dot_attention.1} parent=1 // pred_check
      _
    $region23: #{dot_attention.1} parent=1 // pred_check_branch
      %58 = sbr.rel (0) target = $region25
    $region24: #{dot_attention.1} parent=1 // pred_region
      %60 = dma.done [#allocation6], 32
    $region25: #{dot_attention.1} parent=1 // pred_fallthru
      _
    %v61 = vld [vmem:[#allocation5] sm:$0xff]
    %v62 = vld [vmem:[#allocation5 + $0x8] sm:$0xff]
    %v63 = vld [vmem:[#allocation2] sm:$0x3]
    %v65 = vrot.slane %v63, 1
    %v66 = vperm.slane %v63, 0
    %v67 = vperm.slane %v65, 0
    %v70 = vmul.f32 %v61, %v66
    %v71 = vmul.f32 %v62, %v67
    %vm72 = vcmask 261120
    %v73 = vsel %vm72, %v70, 0.0
    %74 = vadd.xlane.f32.xlu0 %v73
    %v75 = vpop.xlane.xlu0 %74
    %v76 = vsel %vm72, %v71, 0.0
    %77 = vadd.xlane.f32.xlu0 %v76
    %v78 = vpop.xlane.xlu0 %77
    %v79 = vld [vmem:[#allocation7] sm:$0x3]
    %vm80 = vcmp.ne.f32.partialorder %v79, 0.0
    %v83 = vlaneseq
    %v84 = vand.u32 %v83, 127
    %v85 = vperm.slane %v75, %v84
    %v86 = vperm.slane %v78, %v84
    %vm87 = vcmask 1041409
    %v88 = vsel %vm87, %v86, %v85
    %v90 = vsel %vm80, %v88, -1e+30
    %vm91 = vcmask 58368
    %v92 = vsel %vm91, %v90, -inf
    %93 = vmax.xlane.f32.xlu0 %v92
    %v94 = vpop.xlane.xlu0 %93
    %v95 = vsub.f32 %v90, %v94
    %v96 = vmul.f32 %v95, 1.442695
    %v97 = vpow.pop %v96
    %v98 = vsel %vm91, %v97, 0.0
    %99 = vadd.xlane.f32.xlu0 %v98
    %v100 = vpop.xlane.xlu0 %99
    %v101 = vrcp.pop %v100
    %v102 = vmul.f32 %v100, %v101
    %v103 = vsub.f32 1.0, %v102
    %v104 = vmul.f32 %v101, %v103
    %v105 = vadd.f32 %v101, %v104
    %vm106 = vweird.f32 %v100
    %vm107 = vweird.f32 %v101
    %vm108 = vmor %vm106, %vm107
    %v109 = vsel %vm108, %v101, %v105
    %v110 = vand.u32 2147483647, %v100
    %vm111 = vcmp.eq.f32.partialorder %v110, 8.507059e+37
    %v112 = vand.u32 %v100, 2147483648
    %v113 = vor.u32 1.1754944e-38, %v112
    %v114 = vsel %vm111, %v113, %v109
    %v115 = vmul.f32 %v97, %v114
    %116 = vst.msk [vmem:[#allocation9] sm:$0x3] %vm91, %v115
    %v117 = vperm.slane %v115, 0
    %v118 = vlaneseq
    %v119 = vshrl.u32 %v118, 7
    %121 = vset.pattern.permute.xlu0 %v119
    %122 = vperm.xlu0 %121, %v117
    %v123 = vpop.permute.xlu0 %122
    %v124 = vperm.slane %v115, 1
    %v125 = vlaneseq
    %v126 = vshrl.u32 %v125, 7
    %128 = vset.pattern.permute.xlu0 %v126
    %129 = vperm.xlu0 %128, %v124
    %v130 = vpop.permute.xlu0 %129
    %v131 = vmul.f32 %v123, %v61
    %v132 = vmul.f32 %v130, %v62
    %v133 = vsel %vm72, %v131, 0.0
    %v134 = vrot.slane %v133, 4
    %v135 = vadd.f32 %v133, %v134
    %v136 = vrot.slane %v135, 2
    %v137 = vadd.f32 %v135, %v136
    %v138 = vrot.slane %v137, 1
    %v139 = vadd.f32 %v137, %v138
    %v140 = vsel %vm72, %v132, 0.0
    %v141 = vrot.slane %v140, 4
    %v142 = vadd.f32 %v140, %v141
    %v143 = vrot.slane %v142, 2
    %v144 = vadd.f32 %v142, %v143
    %v145 = vrot.slane %v144, 1
    %v146 = vadd.f32 %v144, %v145
    %v149 = vsel %vm87, %v146, %v139
    %vm151 = vcmask 254976
    %152 = vst.msk [vmem:[#allocation8] sm:$0x3] %vm151, %v149
    // Predicated region
    $region26: #{dot_attention.1} parent=1 // pred_check
      _
    $region27: #{dot_attention.1} parent=1 // pred_check_branch
      %154 = sbr.rel (0) target = $region29
    $region28: #{dot_attention.1} parent=1 // pred_region
      %156 = vsyncadd [#allocation4], 0
      %s158 = sshll.u32 [#allocation8], 4
      %s159 = int_to_ptr.vmem [resolvable:$true] %s158
      %s160 = sshll.u32 %s3, 4
      %s161 = int_to_ptr.hbm [resolvable:$true] %s160
      %163 = dma.vmem_to_hbm [thread:$0]  %s159, 32, %s161, [#allocation4]
    $region29: #{dot_attention.1} parent=1 // pred_fallthru
      _
    // Predicated region
    $region30: #{dot_attention.1} parent=1 // pred_check
      _
    $region31: #{dot_attention.1} parent=1 // pred_check_branch
      %165 = sbr.rel (0) target = $region33
    $region32: #{dot_attention.1} parent=1 // pred_region
      %167 = vsyncadd [#allocation10], 0
      %s169 = sshll.u32 [#allocation9], 4
      %s170 = int_to_ptr.vmem [resolvable:$true] %s169
      %s171 = sshll.u32 %s4, 4
      %s172 = int_to_ptr.hbm [resolvable:$true] %s171
      %174 = dma.vmem_to_hbm [thread:$0]  %s170, 32, %s172, [#allocation10]
    $region33: #{dot_attention.1} parent=1 // pred_fallthru
      _
    // Predicated region
    $region34: #{dot_attention.1} parent=1 // pred_check
      _
    $region35: #{dot_attention.1} parent=1 // pred_check_branch
      %176 = sbr.rel (0) target = $region37
    $region36: #{dot_attention.1} parent=1 // pred_region
      %178 = dma.done [#allocation4], 32
    $region37: #{dot_attention.1} parent=1 // pred_fallthru
      _
    // Predicated region
    $region38: #{dot_attention.1} parent=1 // pred_check
      _
    $region39: #{dot_attention.1} parent=1 // pred_check_branch
      %180 = sbr.rel (0) target = $region41
    $region40: #{dot_attention.1} parent=1 // pred_region
      %182 = dma.done [#allocation10], 32
    $region41: #{dot_attention.1} parent=1 // pred_fallthru
      _
    %183 = vsyncpa [#allocation3], 1
    %184 = vsyncpa [#allocation6], 1
    %185 = vsyncpa [#allocation4], 1
    %186 = vsyncpa [#allocation10], 1

</llo_original>
